<compile_context>
chip_gen: v5e
topology: v5e:2x2
jax: 0.10.0
libtpu: 0.0.40
codegen_flags: <defaults>
</compile_context>

<pallas_src>
import math

import jax
import jax.numpy as jnp
from jax.experimental import pallas as pl
from jax.experimental.pallas import tpu as pltpu

_LANE = 128
_TARGET_BLOCK_BYTES = 2 * 1024 * 1024   # per block; ~4x with double-buffered in + out


# ----------------------------------------------------------------------------
# Pallas kernel: broadcast per-sample scale over a (GB, TR, L) tile.
# ----------------------------------------------------------------------------
def _dropsample_kernel(scale_ref, x_ref, o_ref):
    # scale_ref : VMEM (GB, 1, 1) f32  per-sample scale: 0.0 (drop) or 1/(1-prob) (keep)
    # x_ref     : VMEM (GB, TR, L)     input tile
    # o_ref     : VMEM (GB, TR, L)     output tile
    s = scale_ref[...].astype(x_ref.dtype)        # multiply in the native dtype
    o_ref[...] = x_ref[...] * s


def _choose_tiles(batch, rows, lanes, itemsize):
    """Pick (batch_group, row_tile) so each block is ~_TARGET_BLOCK_BYTES."""
    sublane = max(8, 32 // itemsize)              # 8 for f32, 16 for bf16, 32 for int8/fp8
    per_sample = rows * lanes * itemsize
    if per_sample >= _TARGET_BLOCK_BYTES and rows > 1:
        # Large samples: tile the row axis inside one sample. Bounds VMEM independently
        # of the per-sample size and guarantees >=2 grid steps even at batch == 1.
        tr = (_TARGET_BLOCK_BYTES // (lanes * itemsize)) // sublane * sublane
        tr = min(max(tr, sublane), rows)
        return 1, tr
    # Small samples: pack several batch samples per grid step to amortize step overhead.
    gb = max(1, min(batch, _TARGET_BLOCK_BYTES // per_sample))
    return gb, rows


def _dropsample_apply(x, scale_f32):
    """x: (B, ...) any trailing shape; scale_f32: (B,) per-sample multiplier."""
    batch = x.shape[0]
    total = int(math.prod(x.shape[1:]))
    itemsize = jnp.dtype(x.dtype).itemsize

    if total % _LANE == 0:
        rows, lanes = total // _LANE, _LANE       # lane-dense: full unmasked 128-lane stores
    else:
        # Ragged trailing size: keep the full extent as the lane dim (masked tail stores
        # inside the kernel) instead of wrapper-side pad + slice HBM passes.
        # TODO(synk): for very large ragged samples this places the whole sample in one
        # block; in-kernel masked row tiling would bound VMEM further.
        rows, lanes = 1, total
    xr = x.reshape(batch, rows, lanes)            # contiguous collapse: free reshape

    gb, tr = _choose_tiles(batch, rows, lanes, itemsize)
    grid = (pl.cdiv(batch, gb), pl.cdiv(rows, tr))

    block_bytes = gb * tr * lanes * itemsize
    vmem_limit = int(min(64 << 20, max(4 * block_bytes + (4 << 20), 16 << 20)))

    out = pl.pallas_call(
        _dropsample_kernel,
        out_shape=jax.ShapeDtypeStruct((batch, rows, lanes), x.dtype),
        grid=grid,
        in_specs=[
            pl.BlockSpec((gb, 1, 1), lambda b, r: (b, 0, 0)),
            pl.BlockSpec((gb, tr, lanes), lambda b, r: (b, r, 0)),
        ],
        out_specs=pl.BlockSpec((gb, tr, lanes), lambda b, r: (b, r, 0)),
        compiler_params=pltpu.CompilerParams(
            dimension_semantics=("parallel", "parallel"),
            vmem_limit_bytes=vmem_limit,
        ),
    )(scale_f32.reshape(batch, 1, 1), xr)

    return out.reshape(x.shape)


# ----------------------------------------------------------------------------
# Public wrapper matching Dropsample.forward
# ----------------------------------------------------------------------------
def dropsample(x, *, prob, key, training=True):
    """Per-sample drop: keep each sample with probability (1 - prob), scaling kept
    samples by 1/(1 - prob). Identity when prob == 0 or not training."""
    if prob == 0.0 or not training:
        return x
    batch = x.shape[0]
    u = jax.random.uniform(key, (batch,), dtype=jnp.float32)   # tiny (B,) draw, plain JAX
    scale = jnp.where(u > prob, jnp.float32(1.0 / (1.0 - prob)), jnp.float32(0.0))
    return _dropsample_apply(x, scale)


# ----------------------------------------------------------------------------
if __name__ == "__main__":
    key = jax.random.PRNGKey(0)
    kx, kd = jax.random.split(key)

    B, C, H, W = 2, 4, 16, 16          # NCHW, small shapes consistent with the module
    prob = 0.25
    x = jax.random.normal(kx, (B, C, H, W), jnp.float32)

    # Same RNG draw as the wrapper uses -> reference scale.
    u = jax.random.uniform(kd, (B,), dtype=jnp.float32)
    keep = (u > prob).astype(jnp.float32)
    scale_ref = (keep / (1.0 - prob))[:, None, None, None]

    # 1) Lane-aligned training path (C*H*W % 128 == 0).
    out = jax.block_until_ready(dropsample(x, prob=prob, key=kd, training=True))
    assert out.shape == (B, C, H, W), out.shape
    assert jnp.allclose(out, x * scale_ref, atol=1e-6, rtol=1e-6)

    # 2) Ragged trailing size (C*H*W % 128 != 0) exercises the masked-tail path.
    x2 = jax.random.normal(kx, (B, 3, 5, 7), jnp.float32)
    out2 = jax.block_until_ready(dropsample(x2, prob=prob, key=kd, training=True))
    assert jnp.allclose(out2, x2 * scale_ref, atol=1e-6, rtol=1e-6)

    # 3) bf16 input: multiply stays in bf16 inside the kernel.
    xb = x.astype(jnp.bfloat16)
    outb = jax.block_until_ready(dropsample(xb, prob=prob, key=kd, training=True))
    refb = (xb.astype(jnp.float32) * scale_ref).astype(jnp.bfloat16)
    assert jnp.allclose(outb.astype(jnp.float32), refb.astype(jnp.float32),
                        atol=1e-2, rtol=1e-2)

    # 4) Identity paths: eval mode, or prob == 0.
    assert bool(jnp.array_equal(dropsample(x, prob=prob, key=kd, training=False), x))
    assert bool(jnp.array_equal(dropsample(x, prob=0.0, key=kd, training=True), x))

    print("KERNEL_OK")
</pallas_src>

<mosaic_0001>
module attributes {stable_mosaic.version = 11 : i64} {
  func.func @_dropsample_kernel(%arg0: i32, %arg1: i32, %arg2: memref<2x1x1xf32, #tpu.memory_space<vmem>>, %arg3: memref<2x8x128xf32, #tpu.memory_space<vmem>>, %arg4: memref<2x8x128xf32, #tpu.memory_space<vmem>>) attributes {dimension_semantics = [#tpu.dimension_semantics<parallel>, #tpu.dimension_semantics<parallel>], iteration_bounds = array<i64: 1, 1>, scalar_prefetch = 0 : i64, scratch_operands = 0 : i64, tpu.core_type = #tpu.core_type<tc>, window_params = [{transform_indices = @transform_0, window_bounds = array<i64: 2, 1, 1>}, {transform_indices = @transform_1, window_bounds = array<i64: 2, 8, 128>}, {transform_indices = @transform_2, window_bounds = array<i64: 2, 8, 128>}]} {
    %c0 = arith.constant 0 : index
    %c0_0 = arith.constant 0 : index
    %c0_1 = arith.constant 0 : index
    %0 = vector.load %arg2[%c0, %c0_0, %c0_1] : memref<2x1x1xf32, #tpu.memory_space<vmem>>, vector<2x1x1xf32>
    %c0_2 = arith.constant 0 : index
    %c0_3 = arith.constant 0 : index
    %c0_4 = arith.constant 0 : index
    %1 = vector.load %arg3[%c0_2, %c0_3, %c0_4] : memref<2x8x128xf32, #tpu.memory_space<vmem>>, vector<2x8x128xf32>
    %2 = vector.broadcast %0 : vector<2x1x1xf32> to vector<2x8x128xf32>
    %3 = arith.mulf %1, %2 : vector<2x8x128xf32>
    %c0_5 = arith.constant 0 : index
    %c0_6 = arith.constant 0 : index
    %c0_7 = arith.constant 0 : index
    %4 = vector.load %arg4[%c0_5, %c0_6, %c0_7] : memref<2x8x128xf32, #tpu.memory_space<vmem>>, vector<2x8x128xf32>
    tpu.vector_store %arg4[%c0_5, %c0_6, %c0_7], %3 {strides = array<i32>} : memref<2x8x128xf32, #tpu.memory_space<vmem>>, vector<2x8x128xf32>,
    return
  }
  func.func @transform_0(%arg0: i32, %arg1: i32) -> (i32, i32, i32) {
    %c0_i32 = arith.constant 0 : i32
    %c0_i32_0 = arith.constant 0 : i32
    %c0_i32_1 = arith.constant 0 : i32
    return %arg0, %c0_i32, %c0_i32_0 : i32, i32, i32
  }
  func.func @transform_1(%arg0: i32, %arg1: i32) -> (i32, i32, i32) {
    %c0_i32 = arith.constant 0 : i32
    %c0_i32_0 = arith.constant 0 : i32
    return %arg0, %arg1, %c0_i32 : i32, i32, i32
  }
  func.func @transform_2(%arg0: i32, %arg1: i32) -> (i32, i32, i32) {
    %c0_i32 = arith.constant 0 : i32
    %c0_i32_0 = arith.constant 0 : i32
    return %arg0, %arg1, %c0_i32 : i32, i32, i32
  }
}

</mosaic_0001>

<llo_original>
// kernel: tpu_custom_call.1
$region0: #{tpu_custom_call.1}
  #allocation0 [shape = 'u32[]', space=smem, size = 0x4, offset = 0x4, fixed_abs, tag = 'smem constant byte address 0x4 - core index']
  #allocation1 [shape = 'u32[72,128]{1,0:T(1,128)}', space=vmem, size = 0x9000, scoped, tag = 'internal scratch']
  %s0 = inlined_call_operand.vmem [shape: f32[2,1,1], index: 0, kind: input, shape index: {}]
  %s1 = inlined_call_operand.hbm [shape: f32[2,8,128], index: 1, kind: input, shape index: {}]
  %s2 = inlined_call_operand.hbm [shape: f32[2,8,128], index: 2, kind: output, shape index: {}]
  %s3 = sld [smem:[#allocation0]]
  $region22: #{tpu_custom_call.1} parent=0
    _
  %s5 = ssub.s32 1, %s3
  %s6 = scalar_select 0, %s5, %s3
  $region1: #{tpu_custom_call.1} parent=0
    #allocation2 [shape = 'u8[8192]{0}', space=vmem, size = 0x2000, scoped, tag = 'input window, operand 1, single buffered']
    #allocation3 [shape = 's32[1]{0}', space=sflag, size = 0x4, scoped, tag = 'scoped memory for tpu_custom_call.1']
    #allocation4 [shape = 's32[1]{0}', space=sflag, size = 0x4, scoped, tag = 'scoped memory for tpu_custom_call.1']
    #allocation5 [shape = 'u8[8192]{0}', space=vmem, size = 0x2000, scoped, tag = 'output window, operand 0, single buffered']
    %7 = vsyncpa [#allocation3], 0
    %8 = vsyncpa [#allocation4], 0
    // Predicated region
    $region2: #{tpu_custom_call.1} parent=1 // pred_check
      _
    $region3: #{tpu_custom_call.1} parent=1 // pred_check_branch
      %10 = sbr.rel (0) target = $region5
    $region4: #{tpu_custom_call.1} parent=1 // pred_region
      _
    $region5: #{tpu_custom_call.1} parent=1 // pred_fallthru
      _
    // Predicated region
    $region6: #{tpu_custom_call.1} parent=1 // pred_check
      _
    $region7: #{tpu_custom_call.1} parent=1 // pred_check_branch
      %12 = sbr.rel (0) target = $region9
    $region8: #{tpu_custom_call.1} parent=1 // pred_region
      %14 = vsyncadd [#allocation3], 0
      %s15 = sshll.u32 %s1, 4
      %s16 = int_to_ptr.hbm [resolvable:$true] %s15
      %s17 = sshll.u32 [#allocation2], 4
      %s18 = int_to_ptr.vmem [resolvable:$true] %s17
      %23 = dma.hbm_to_vmem [thread:$0]  %s16, 256, %s18, [#allocation3], 128, 128, 8
    $region9: #{tpu_custom_call.1} parent=1 // pred_fallthru
      _
    // Predicated region
    $region10: #{tpu_custom_call.1} parent=1 // pred_check
      _
    $region11: #{tpu_custom_call.1} parent=1 // pred_check_branch
      %25 = sbr.rel (0) target = $region13
    $region12: #{tpu_custom_call.1} parent=1 // pred_region
      %27 = dma.done [#allocation3], 256
    $region13: #{tpu_custom_call.1} parent=1 // pred_fallthru
      _
    %v28 = vld [vmem:[%s0] sm:$0x1]
    %v29 = vld [vmem:[%s0 + $0x1] sm:$0x1]
    %v30 = vld [vmem:[#allocation2] sm:$0xff]
    %v31 = vld [vmem:[#allocation2 + $0x8] sm:$0xff]
    %v34 = vperm.slane %v28, 0
    %v35 = vperm.slane %v29, 0
    %36 = vset.pattern.permute.xlu0 0
    %37 = vperm.xlu0 %36, %v34
    %v38 = vpop.permute.xlu0 %37
    %40 = vset.pattern.permute.xlu0 0
    %41 = vperm.xlu0 %40, %v35
    %v42 = vpop.permute.xlu0 %41
    %v44 = vmul.f32 %v30, %v38
    %v45 = vmul.f32 %v31, %v42
    %46 = vst [vmem:[#allocation5] sm:$0xff] %v44
    %47 = vst [vmem:[#allocation5 + $0x8] sm:$0xff] %v45
    // Predicated region
    $region14: #{tpu_custom_call.1} parent=1 // pred_check
      _
    $region15: #{tpu_custom_call.1} parent=1 // pred_check_branch
      %49 = sbr.rel (0) target = $region17
    $region16: #{tpu_custom_call.1} parent=1 // pred_region
      %51 = vsyncadd [#allocation4], 0
      %s52 = sshll.u32 [#allocation5], 4
      %s53 = int_to_ptr.vmem [resolvable:$true] %s52
      %s54 = sshll.u32 %s2, 4
      %s55 = int_to_ptr.hbm [resolvable:$true] %s54
      %60 = dma.vmem_to_hbm [thread:$0]  %s53, 256, %s55, [#allocation4], 128, 128, 8
    $region17: #{tpu_custom_call.1} parent=1 // pred_fallthru
      _
    // Predicated region
    $region18: #{tpu_custom_call.1} parent=1 // pred_check
      _
    $region19: #{tpu_custom_call.1} parent=1 // pred_check_branch
      %62 = sbr.rel (0) target = $region21
    $region20: #{tpu_custom_call.1} parent=1 // pred_region
      %64 = dma.done [#allocation4], 256
    $region21: #{tpu_custom_call.1} parent=1 // pred_fallthru
      _
    %65 = vsyncpa [#allocation3], 1
    %66 = vsyncpa [#allocation4], 1

</llo_original>
